<compile_context>
chip_gen: v5e
topology: v5e:2x2
jax: 0.10.0
libtpu: 0.0.40
codegen_flags: <defaults>
</compile_context>

<pallas_src>
import functools

import jax
import jax.numpy as jnp
from jax.experimental import pallas as pl
from jax.experimental.pallas import tpu as pltpu


def _gefe_bn_kernel(x_ref, gamma_ref, beta_ref, o_ref, *, eps, inv_count):
    # x_ref block: (N, cg_blk, HW).  Per-channel batch stats over axes (0, 2).
    x = x_ref[...].astype(jnp.float32)

    s = jnp.sum(x, axis=(0, 2), keepdims=True)        # (1, cg_blk, 1)
    s2 = jnp.sum(x * x, axis=(0, 2), keepdims=True)   # (1, cg_blk, 1)
    mean = s * inv_count
    var = jnp.maximum(s2 * inv_count - mean * mean, 0.0)   # biased variance
    inv_std = jax.lax.rsqrt(var + eps)

    # Fold the affine transform into a per-channel scale/bias.
    scale = gamma_ref[...] * inv_std                   # (1, cg_blk, 1)
    bias = beta_ref[...] - mean * scale                # (1, cg_blk, 1)

    o_ref[...] = (x * scale + bias).astype(o_ref.dtype)


def _pick_channel_block(cg, n, hw, itemsize, max_block_bytes):
    """Channel-tile size: multiple of 8 (or full dim), VMEM-bounded, >=2 tiles."""
    bytes_per_channel = max(1, n * hw * itemsize)
    cap = max(1, max_block_bytes // bytes_per_channel)
    if cg <= 8:
        return cg                       # full channel dim is always legal
    target = min(cap, pl.cdiv(cg, 2))   # aim for >=2 grid steps (megacore)
    return max(8, 8 * (target // 8))    # multiple of 8 per TPU tiling rules


def gefe_batchnorm2d(x, gamma, beta, *, eps=1e-5):
    """x: [N, C, G, H, W]; gamma, beta: [C].  Training-mode BN per G-slice."""
    assert x.ndim == 5
    N, C, G, H, W = x.shape
    CG, HW = C * G, H * W

    # Free reshape (merges adjacent minor dims; no HBM relayout).
    x3 = x.reshape(N, CG, HW)

    # Shared affine params, repeated along G so channel j = c*G + g uses gamma[c].
    gamma_cg = jnp.repeat(gamma.astype(jnp.float32), G).reshape(1, CG, 1)
    beta_cg = jnp.repeat(beta.astype(jnp.float32), G).reshape(1, CG, 1)

    cg_blk = _pick_channel_block(
        CG, N, HW, jnp.dtype(x.dtype).itemsize, max_block_bytes=4 * 1024 * 1024
    )
    grid = (pl.cdiv(CG, cg_blk),)

    out3 = pl.pallas_call(
        functools.partial(
            _gefe_bn_kernel, eps=float(eps), inv_count=1.0 / float(N * HW)
        ),
        out_shape=jax.ShapeDtypeStruct((N, CG, HW), x.dtype),
        grid_spec=pltpu.PrefetchScalarGridSpec(
            num_scalar_prefetch=0,
            grid=grid,
            in_specs=[
                pl.BlockSpec((N, cg_blk, HW), lambda i: (0, i, 0)),
                pl.BlockSpec((1, cg_blk, 1), lambda i: (0, i, 0)),
                pl.BlockSpec((1, cg_blk, 1), lambda i: (0, i, 0)),
            ],
            out_specs=pl.BlockSpec((N, cg_blk, HW), lambda i: (0, i, 0)),
        ),
        compiler_params=pltpu.CompilerParams(
            dimension_semantics=("parallel",),
            vmem_limit_bytes=48 * 1024 * 1024,
        ),
    )(x3, gamma_cg, beta_cg)

    # Free reshape back to the module's output layout.
    return out3.reshape(N, C, G, H, W)


def _reference(x, gamma, beta, eps=1e-5):
    # Pure-JAX reference of the same semantics (per-G-slice batch norm).
    xf = x.astype(jnp.float32)
    mean = jnp.mean(xf, axis=(0, 3, 4), keepdims=True)      # (1, C, G, 1, 1)
    var = jnp.mean((xf - mean) ** 2, axis=(0, 3, 4), keepdims=True)
    g = gamma.reshape(1, -1, 1, 1, 1)
    b = beta.reshape(1, -1, 1, 1, 1)
    return ((xf - mean) / jnp.sqrt(var + eps) * g + b).astype(x.dtype)


if __name__ == "__main__":
    N, C, G, H, W = 2, 4, 3, 16, 16
    key = jax.random.PRNGKey(0)
    kx, kg, kb = jax.random.split(key, 3)

    x = jax.random.normal(kx, (N, C, G, H, W), dtype=jnp.float32)
    # Deterministic synthetic affine params (shared across all G slices).
    gamma = 1.0 + 0.1 * jax.random.normal(kg, (C,), dtype=jnp.float32)
    beta = 0.1 * jax.random.normal(kb, (C,), dtype=jnp.float32)

    out = gefe_batchnorm2d(x, gamma, beta, eps=1e-5)
    out = jax.block_until_ready(out)

    ref = _reference(x, gamma, beta, eps=1e-5)
    assert out.shape == (N, C, G, H, W)
    assert jnp.allclose(out, ref, atol=1e-4, rtol=1e-4)

    print("KERNEL_OK")
</pallas_src>

<mosaic_0001>
module attributes {stable_mosaic.version = 11 : i64} {
  func.func @_gefe_bn_kernel(%arg0: i32, %arg1: memref<2x8x256xf32, #tpu.memory_space<vmem>>, %arg2: memref<1x8x1xf32, #tpu.memory_space<vmem>>, %arg3: memref<1x8x1xf32, #tpu.memory_space<vmem>>, %arg4: memref<2x8x256xf32, #tpu.memory_space<vmem>>) attributes {dimension_semantics = [#tpu.dimension_semantics<parallel>], iteration_bounds = array<i64: 2>, scalar_prefetch = 0 : i64, scratch_operands = 0 : i64, tpu.core_type = #tpu.core_type<tc>, window_params = [{transform_indices = @transform_0, window_bounds = array<i64: 2, 8, 256>}, {transform_indices = @transform_1, window_bounds = array<i64: 1, 8, 1>}, {transform_indices = @transform_2, window_bounds = array<i64: 1, 8, 1>}, {transform_indices = @transform_3, window_bounds = array<i64: 2, 8, 256>}]} {
    %c0 = arith.constant 0 : index
    %c0_0 = arith.constant 0 : index
    %c0_1 = arith.constant 0 : index
    %0 = vector.load %arg1[%c0, %c0_0, %c0_1] : memref<2x8x256xf32, #tpu.memory_space<vmem>>, vector<2x8x256xf32>
    %cst = arith.constant dense<0.000000e+00> : vector<8xf32>
    %1 = vector.multi_reduction <add>, %0, %cst [0, 2] : vector<2x8x256xf32> to vector<8xf32>
    %2 = vector.shape_cast %1 : vector<8xf32> to vector<1x8x1xf32>
    %3 = arith.mulf %0, %0 : vector<2x8x256xf32>
    %cst_2 = arith.constant dense<0.000000e+00> : vector<8xf32>
    %4 = vector.multi_reduction <add>, %3, %cst_2 [0, 2] : vector<2x8x256xf32> to vector<8xf32>
    %5 = vector.shape_cast %4 : vector<8xf32> to vector<1x8x1xf32>
    %cst_3 = arith.constant 0.001953125 : f32
    %6 = vector.broadcast %cst_3 : f32 to vector<1x8x1xf32>
    %7 = arith.mulf %2, %6 : vector<1x8x1xf32>
    %cst_4 = arith.constant 0.001953125 : f32
    %8 = vector.broadcast %cst_4 : f32 to vector<1x8x1xf32>
    %9 = arith.mulf %5, %8 : vector<1x8x1xf32>
    %10 = arith.mulf %7, %7 : vector<1x8x1xf32>
    %11 = arith.subf %9, %10 : vector<1x8x1xf32>
    %cst_5 = arith.constant 0.000000e+00 : f32
    %12 = vector.broadcast %cst_5 : f32 to vector<1x8x1xf32>
    %13 = arith.maximumf %11, %12 : vector<1x8x1xf32>
    %cst_6 = arith.constant 9.99999974E-6 : f32
    %14 = vector.broadcast %cst_6 : f32 to vector<1x8x1xf32>
    %15 = arith.addf %13, %14 : vector<1x8x1xf32>
    %16 = math.rsqrt %15 : vector<1x8x1xf32>
    %c0_7 = arith.constant 0 : index
    %c0_8 = arith.constant 0 : index
    %c0_9 = arith.constant 0 : index
    %17 = vector.load %arg2[%c0_7, %c0_8, %c0_9] : memref<1x8x1xf32, #tpu.memory_space<vmem>>, vector<1x8x1xf32>
    %18 = arith.mulf %17, %16 : vector<1x8x1xf32>
    %c0_10 = arith.constant 0 : index
    %c0_11 = arith.constant 0 : index
    %c0_12 = arith.constant 0 : index
    %19 = vector.load %arg3[%c0_10, %c0_11, %c0_12] : memref<1x8x1xf32, #tpu.memory_space<vmem>>, vector<1x8x1xf32>
    %20 = arith.mulf %7, %18 : vector<1x8x1xf32>
    %21 = arith.subf %19, %20 : vector<1x8x1xf32>
    %22 = vector.broadcast %18 : vector<1x8x1xf32> to vector<2x8x256xf32>
    %23 = arith.mulf %0, %22 : vector<2x8x256xf32>
    %24 = vector.broadcast %21 : vector<1x8x1xf32> to vector<2x8x256xf32>
    %25 = arith.addf %23, %24 : vector<2x8x256xf32>
    %c0_13 = arith.constant 0 : index
    %c0_14 = arith.constant 0 : index
    %c0_15 = arith.constant 0 : index
    %26 = vector.load %arg4[%c0_13, %c0_14, %c0_15] : memref<2x8x256xf32, #tpu.memory_space<vmem>>, vector<2x8x256xf32>
    tpu.vector_store %arg4[%c0_13, %c0_14, %c0_15], %25 {strides = array<i32>} : memref<2x8x256xf32, #tpu.memory_space<vmem>>, vector<2x8x256xf32>,
    return
  }
  func.func @transform_0(%arg0: i32) -> (i32, i32, i32) {
    %c0_i32 = arith.constant 0 : i32
    %c0_i32_0 = arith.constant 0 : i32
    %c0_i32_1 = arith.constant 0 : i32
    return %c0_i32, %arg0, %c0_i32_0 : i32, i32, i32
  }
  func.func @transform_1(%arg0: i32) -> (i32, i32, i32) {
    %c0_i32 = arith.constant 0 : i32
    %c0_i32_0 = arith.constant 0 : i32
    %c0_i32_1 = arith.constant 0 : i32
    return %c0_i32, %arg0, %c0_i32_0 : i32, i32, i32
  }
  func.func @transform_2(%arg0: i32) -> (i32, i32, i32) {
    %c0_i32 = arith.constant 0 : i32
    %c0_i32_0 = arith.constant 0 : i32
    %c0_i32_1 = arith.constant 0 : i32
    return %c0_i32, %arg0, %c0_i32_0 : i32, i32, i32
  }
  func.func @transform_3(%arg0: i32) -> (i32, i32, i32) {
    %c0_i32 = arith.constant 0 : i32
    %c0_i32_0 = arith.constant 0 : i32
    %c0_i32_1 = arith.constant 0 : i32
    return %c0_i32, %arg0, %c0_i32_0 : i32, i32, i32
  }
}

</mosaic_0001>

<llo_original>
// kernel: tpu_custom_call.1
$region0: #{tpu_custom_call.1}
  #allocation0 [shape = 'u32[]', space=smem, size = 0x4, offset = 0x4, fixed_abs, tag = 'smem constant byte address 0x4 - core index']
  #allocation1 [shape = 'u32[72,128]{1,0:T(1,128)}', space=vmem, size = 0x9000, scoped, tag = 'internal scratch']
  %s0 = inlined_call_operand.vmem [shape: f32[2,12,256], index: 0, kind: input, shape index: {}]
  %s1 = inlined_call_operand.vmem [shape: f32[1,12,1], index: 1, kind: input, shape index: {}]
  %s2 = inlined_call_operand.vmem [shape: f32[1,12,1], index: 2, kind: input, shape index: {}]
  %s3 = inlined_call_operand.vmem [shape: f32[2,12,256], index: 3, kind: output, shape index: {}]
  %s4 = sld [smem:[#allocation0]]
  $region87: #{tpu_custom_call.1} parent=0
    _
  %s6 = ssub.s32 1, %s4
  %s7 = scalar_select 0, %s6, %s4
  $region1: #{tpu_custom_call.1} parent=0
    #allocation2 [shape = 'u8[32768]{0}', space=vmem, size = 0x8000, scoped, tag = 'input window, operand 0']
    #allocation3 [shape = 'u8[32768]{0}', space=vmem, size = 0x8000, scoped, tag = 'output window, operand 0']
    loop: start=0, step=1, limit=4
    $region2: #{tpu_custom_call.1} parent=1 // loop_pre_header
      _
    $region3: #{tpu_custom_call.1} parent=1 // loop_header
      %s9 = sphi 0, %s13
      %p10 = scmp.ge.s32.totalorder %s9, 4
      %s19 = sphi 0, %s21
      %s22 = sphi 0, %s19
      %s23 = sphi 0, %s22
      %s39 = sphi 0, %s23
      %s45 = sphi 0, %s47
      %s48 = sphi 0, %s45
      %s49 = sphi 0, %s48
      %s65 = sphi 0, %s49
      %s71 = sphi 0, %s73
      %s74 = sphi 0, %s71
      %s75 = sphi 0, %s74
      %s91 = sphi 0, %s75
      %s97 = sphi 0, %s99
      %s100 = sphi 0, %s97
      %s101 = sphi 0, %s100
      %s117 = sphi 0, %s101
    $region4: #{tpu_custom_call.1} parent=1 // loop_header_branch
      %12 = sbr.rel (%p10) target = $region8
    $region5: #{tpu_custom_call.1} parent=1 // loop_body
      %s14 = ssub.s32 %s9, 1
      %s15 = ssub.s32 %s9, 2
      %s16 = sadd.s32 %s9, 1
      %s17 = ssub.s32 %s9, %s16
      %p18 = scmp.eq.s32.totalorder %s17, 0
      %s20 = sadd.s32 %s19, 1
      %s21 = scalar_select %p18, %s19, %s20
      %p24 = pneg %p18
      %p25 = scmp.eq.s32.totalorder %s9, 1
      %p26 = por %p24, %p25
      %p27 = scmp.ne.s32.totalorder %s19, %s22
      %p28 = scmp.eq.s32.totalorder %s9, 0
      %p29 = por %p27, %p28
      %p30 = scmp.ne.s32.totalorder %s19, %s22
      %p31 = scmp.eq.s32.totalorder %s14, 1
      %p32 = por %p30, %p31
      %p33 = scmp.ne.s32.totalorder %s22, %s23
      %p34 = scmp.eq.s32.totalorder %s14, 0
      %p35 = por %p33, %p34
      %p36 = scmp.ne.s32.totalorder %s22, %s23
      %p37 = scmp.eq.s32.totalorder %s15, 1
      %p38 = por %p36, %p37
      %p40 = scmp.ne.s32.totalorder %s23, %s39
      %p41 = scmp.eq.s32.totalorder %s15, 0
      %p42 = por %p40, %p41
      %s43 = ssub.s32 %s9, %s16
      %p44 = scmp.eq.s32.totalorder %s43, 0
      %s46 = sadd.s32 %s45, 1
      %s47 = scalar_select %p44, %s45, %s46
      %p50 = pneg %p44
      %p51 = scmp.eq.s32.totalorder %s9, 1
      %p52 = por %p50, %p51
      %p53 = scmp.ne.s32.totalorder %s45, %s48
      %p54 = scmp.eq.s32.totalorder %s9, 0
      %p55 = por %p53, %p54
      %p56 = scmp.ne.s32.totalorder %s45, %s48
      %p57 = scmp.eq.s32.totalorder %s14, 1
      %p58 = por %p56, %p57
      %p59 = scmp.ne.s32.totalorder %s48, %s49
      %p60 = scmp.eq.s32.totalorder %s14, 0
      %p61 = por %p59, %p60
      %p62 = scmp.ne.s32.totalorder %s48, %s49
      %p63 = scmp.eq.s32.totalorder %s15, 1
      %p64 = por %p62, %p63
      %p66 = scmp.ne.s32.totalorder %s49, %s65
      %p67 = scmp.eq.s32.totalorder %s15, 0
      %p68 = por %p66, %p67
      %s69 = ssub.s32 %s9, %s16
      %p70 = scmp.eq.s32.totalorder %s69, 0
      %s72 = sadd.s32 %s71, 1
      %s73 = scalar_select %p70, %s71, %s72
      %p76 = pneg %p70
      %p77 = scmp.eq.s32.totalorder %s9, 1
      %p78 = por %p76, %p77
      %p79 = scmp.ne.s32.totalorder %s71, %s74
      %p80 = scmp.eq.s32.totalorder %s9, 0
      %p81 = por %p79, %p80
      %p82 = scmp.ne.s32.totalorder %s71, %s74
      %p83 = scmp.eq.s32.totalorder %s14, 1
      %p84 = por %p82, %p83
      %p85 = scmp.ne.s32.totalorder %s74, %s75
      %p86 = scmp.eq.s32.totalorder %s14, 0
      %p87 = por %p85, %p86
      %p88 = scmp.ne.s32.totalorder %s74, %s75
      %p89 = scmp.eq.s32.totalorder %s15, 1
      %p90 = por %p88, %p89
      %p92 = scmp.ne.s32.totalorder %s75, %s91
      %p93 = scmp.eq.s32.totalorder %s15, 0
      %p94 = por %p92, %p93
      %s95 = ssub.s32 %s9, %s16
      %p96 = scmp.eq.s32.totalorder %s95, 0
      %s98 = sadd.s32 %s97, 1
      %s99 = scalar_select %p96, %s97, %s98
      %p102 = pneg %p96
      %p103 = scmp.eq.s32.totalorder %s9, 1
      %p104 = por %p102, %p103
      %p105 = scmp.ne.s32.totalorder %s97, %s100
      %p106 = scmp.eq.s32.totalorder %s9, 0
      %p107 = por %p105, %p106
      %p108 = scmp.ne.s32.totalorder %s97, %s100
      %p109 = scmp.eq.s32.totalorder %s14, 1
      %p110 = por %p108, %p109
      %p111 = scmp.ne.s32.totalorder %s100, %s101
      %p112 = scmp.eq.s32.totalorder %s14, 0
      %p113 = por %p111, %p112
      %p114 = scmp.ne.s32.totalorder %s100, %s101
      %p115 = scmp.eq.s32.totalorder %s15, 1
      %p116 = por %p114, %p115
      %p118 = scmp.ne.s32.totalorder %s101, %s117
      %p119 = scmp.eq.s32.totalorder %s15, 0
      %p120 = por %p118, %p119
      %p121 = scmp.le.s32.totalorder 1, %s9
      %p122 = scmp.lt.s32.totalorder %s9, 3
      %p123 = pnand %p121, %p122
      %p124 = pneg %p123
      // Predicated region
      $region9: #{tpu_custom_call.1} parent=5 // pred_check
        _
      $region10: #{tpu_custom_call.1} parent=5 // pred_check_branch
        %126 = sbr.rel (%p123) target = $region12
      $region11: #{tpu_custom_call.1} parent=5 // pred_region
        %s127 = ssub.s32 %s9, 1
      $region12: #{tpu_custom_call.1} parent=5 // pred_fallthru
        _
      %p128 = scmp.lt.s32.totalorder %s9, 2
      // Predicated region
      $region13: #{tpu_custom_call.1} parent=5 // pred_check
        %p129 = pneg %p128
      $region14: #{tpu_custom_call.1} parent=5 // pred_check_branch
        %131 = sbr.rel (%p129) target = $region16
      $region15: #{tpu_custom_call.1} parent=5 // pred_region
        // Predicated region
        $region17: #{tpu_custom_call.1} parent=15 // pred_check
          %p132 = pneg %p29
        $region18: #{tpu_custom_call.1} parent=15 // pred_check_branch
          %134 = sbr.rel (%p132) target = $region20
        $region19: #{tpu_custom_call.1} parent=15 // pred_region
          %s135 = sand.u32 %s19, 1
          %s136 = sand.u32 %s19, 1
          %s137 = smul.addr %s136, 32
          %s138 = scalar_lea.vmem [#allocation2], %s137
          %s139 = smul.addr %s9, 2
          %s140 = smul.addr %s139, 8
          %s141 = scalar_lea.vmem %s0, %s140
          // Predicated region
          $region21: #{tpu_custom_call.1} parent=19 // pred_check
            _
          $region22: #{tpu_custom_call.1} parent=19 // pred_check_branch
            %143 = sbr.rel (0) target = $region24
          $region23: #{tpu_custom_call.1} parent=19 // pred_region
            // Predicated region
            $region25: #{tpu_custom_call.1} parent=23 // pred_check
              _
            $region26: #{tpu_custom_call.1} parent=23 // pred_check_branch
              %145 = sbr.rel (0) target = $region28
            $region27: #{tpu_custom_call.1} parent=23 // pred_region
              loop: start=0, step=1, limit=1
              $region29: #{tpu_custom_call.1} parent=27 // loop_pre_header
                _
              $region30: #{tpu_custom_call.1} parent=27 // loop_header
                %s147 = sphi 0, %s151
                %p148 = scmp.ge.s32.totalorder %s147, 1
                %s152 = sphi %s141, %s141
                %s153 = sphi %s138, %s138
              $region31: #{tpu_custom_call.1} parent=27 // loop_header_branch
                %150 = sbr.rel (%p148) target = $region35
              $region32: #{tpu_custom_call.1} parent=27 // loop_body
                %v154 = vld [vmem:[%s152] sm:$0xff]
                %155 = vst [vmem:[%s153] sm:$0xff] %v154
                %v156 = vld [vmem:[%s152 + $0x8] sm:$0xff]
                %157 = vst [vmem:[%s153 + $0x8] sm:$0xff] %v156
                %v158 = vld [vmem:[%s152 + $0x20] sm:$0xff]
                %159 = vst [vmem:[%s153 + $0x10] sm:$0xff] %v158
                %v160 = vld [vmem:[%s152 + $0x28] sm:$0xff]
                %161 = vst [vmem:[%s153 + $0x18] sm:$0xff] %v160
              $region33: #{tpu_custom_call.1} parent=27 // loop_footer
                %s151 = sadd.s32 1, %s147
              $region34: #{tpu_custom_call.1} parent=27 // loop_footer_branch
                %146 = sbr.rel target = $region30
              $region35: #{tpu_custom_call.1} parent=27 // loop_exit
                _
            $region28: #{tpu_custom_call.1} parent=23 // pred_fallthru
              _
            // Predicated region
            $region36: #{tpu_custom_call.1} parent=23 // pred_check
              _
            $region37: #{tpu_custom_call.1} parent=23 // pred_check_branch
              %163 = sbr.rel target = $region39
            $region38: #{tpu_custom_call.1} parent=23 // pred_region
              _
            $region39: #{tpu_custom_call.1} parent=23 // pred_fallthru
              _
          $region24: #{tpu_custom_call.1} parent=19 // pred_fallthru
            _
          %164 = vnop
        $region20: #{tpu_custom_call.1} parent=15 // pred_fallthru
          _
        // Predicated region
        $region40: #{tpu_custom_call.1} parent=15 // pred_check
          %p165 = pneg %p55
        $region41: #{tpu_custom_call.1} parent=15 // pred_check_branch
          %167 = sbr.rel (%p165) target = $region43
        $region42: #{tpu_custom_call.1} parent=15 // pred_region
          %p168 = scmp.lt.s32.totalorder %s9, 1
          %s169 = scalar_select %p168, %s9, 1
          %s170 = smul.addr %s169, 8
          %s171 = scalar_lea.vmem %s1, %s170
        $region43: #{tpu_custom_call.1} parent=15 // pred_fallthru
          _
        // Predicated region
        $region44: #{tpu_custom_call.1} parent=15 // pred_check
          %p172 = pneg %p81
        $region45: #{tpu_custom_call.1} parent=15 // pred_check_branch
          %174 = sbr.rel (%p172) target = $region47
        $region46: #{tpu_custom_call.1} parent=15 // pred_region
          %p175 = scmp.lt.s32.totalorder %s9, 1
          %s176 = scalar_select %p175, %s9, 1
          %s177 = smul.addr %s176, 8
          %s178 = scalar_lea.vmem %s2, %s177
        $region47: #{tpu_custom_call.1} parent=15 // pred_fallthru
          _
      $region16: #{tpu_custom_call.1} parent=5 // pred_fallthru
        _
      %p179 = scmp.le.s32.totalorder 1, %s9
      %p180 = scmp.lt.s32.totalorder %s9, 3
      %p181 = pnand %p179, %p180
      %p182 = pneg %p181
      // Predicated region
      $region48: #{tpu_custom_call.1} parent=5 // pred_check
        _
      $region49: #{tpu_custom_call.1} parent=5 // pred_check_branch
        %184 = sbr.rel (%p181) target = $region51
      $region50: #{tpu_custom_call.1} parent=5 // pred_region
        %s185 = ssub.s32 %s9, 1
        %s186 = sand.u32 %s22, 1
        %s187 = sand.u32 %s22, 1
        %s188 = smul.addr %s187, 32
        %s189 = scalar_lea.vmem [#allocation2], %s188
        // Predicated region
        $region52: #{tpu_custom_call.1} parent=50 // pred_check
          %p190 = pneg %p35
        $region53: #{tpu_custom_call.1} parent=50 // pred_check_branch
          %192 = sbr.rel (%p190) target = $region55
        $region54: #{tpu_custom_call.1} parent=50 // pred_region
          _
        $region55: #{tpu_custom_call.1} parent=50 // pred_fallthru
          _
        %s193 = sand.u32 %s22, 1
        %s194 = sand.u32 %s22, 1
        %s195 = smul.addr %s194, 32
        %s196 = scalar_lea.vmem [#allocation2], %s195
        %p197 = pneg %p35
        %p198 = pneg %p32
        %p199 = scmp.lt.s32.totalorder %s14, 1
        %s200 = scalar_select %p199, %s14, 1
        %s201 = smul.addr %s200, 8
        %s202 = scalar_lea.vmem %s1, %s201
        %p203 = pneg %p61
        %p204 = pneg %p58
        %p205 = scmp.lt.s32.totalorder %s14, 1
        %s206 = scalar_select %p205, %s14, 1
        %s207 = smul.addr %s206, 8
        %s208 = scalar_lea.vmem %s2, %s207
        %p209 = pneg %p87
        %p210 = pneg %p84
        %p211 = pneg %p113
        %p212 = pneg %p110
        %s213 = sand.u32 %s100, 1
        %s214 = sand.u32 %s100, 1
        %s215 = smul.addr %s214, 32
        %s216 = scalar_lea.vmem [#allocation3], %s215
        %p217 = scmp.lt.s32.totalorder %s14, 1
        %s218 = scalar_select %p217, %s14, 1
        %s219 = smul.addr %s218, 8
        %s220 = scalar_lea.vmem %s1, %s219
        %p221 = scmp.lt.s32.totalorder %s14, 1
        %s222 = scalar_select %p221, %s14, 1
        %s223 = smul.addr %s222, 8
        %s224 = scalar_lea.vmem %s2, %s223
        %v225 = vld [vmem:[%s189] sm:$0xff]
        %v226 = vld [vmem:[%s189 + $0x8] sm:$0xff]
        %v227 = vld [vmem:[%s189 + $0x10] sm:$0xff]
        %v228 = vld [vmem:[%s189 + $0x18] sm:$0xff]
        %v229 = vadd.f32 %v225, %v226
        %v230 = vadd.f32 %v229, %v227
        %v231 = vadd.f32 %v230, %v228
        %232 = vadd.xlane.f32.xlu0 %v231
        %v233 = vpop.xlane.xlu0 %232
        %v234 = vmul.f32 %v225, %v225
        %v235 = vmul.f32 %v226, %v226
        %v236 = vmul.f32 %v227, %v227
        %v237 = vmul.f32 %v228, %v228
        %v238 = vadd.f32 %v234, %v235
        %v239 = vadd.f32 %v238, %v236
        %v240 = vadd.f32 %v239, %v237
        %241 = vadd.xlane.f32.xlu0 %v240
        %v242 = vpop.xlane.xlu0 %241
        %v243 = vmul.f32 %v233, 0.001953125
        %v244 = vmul.f32 %v242, 0.001953125
        %v245 = vmul.f32 %v243, %v243
        %v246 = vsub.f32 %v244, %v245
        %v247 = vmax.f32 %v246, 0.0
        %v248 = vadd.f32 %v247, 1e-05
        %v249 = vrsqrt.pop %v248
        %v250 = vmul.f32 %v249, %v248
        %v251 = vmul.f32 %v250, %v249
        %v252 = vmul.f32 0.5, %v251
        %v253 = vsub.f32 1.5, %v252
        %v254 = vmul.f32 %v249, %v253
        %vm255 = vweird.f32 %v248
        %vm256 = vweird.f32 %v249
        %vm257 = vmor %vm255, %vm256
        %v258 = vsel %vm257, %v249, %v254
        %v259 = vld [vmem:[%s220] sm:$0xff]
        %v260 = vmul.f32 %v259, %v258
        %v261 = vld [vmem:[%s224] sm:$0xff]
        %v262 = vmul.f32 %v243, %v260
        %v263 = vsub.f32 %v261, %v262
        %265 = vset.pattern.permute.xlu0 0
        %266 = vperm.xlu0 %265, %v260
        %v267 = vpop.permute.xlu0 %266
        %v269 = vmul.f32 %v225, %v267
        %v270 = vmul.f32 %v226, %v267
        %v271 = vmul.f32 %v227, %v267
        %v272 = vmul.f32 %v228, %v267
        %274 = vset.pattern.permute.xlu0 0
        %275 = vperm.xlu0 %274, %v263
        %v276 = vpop.permute.xlu0 %275
        %v278 = vadd.f32 %v269, %v276
        %v279 = vadd.f32 %v270, %v276
        %v280 = vadd.f32 %v271, %v276
        %v281 = vadd.f32 %v272, %v276
        %282 = vst [vmem:[%s216] sm:$0xff] %v278
        %283 = vst [vmem:[%s216 + $0x8] sm:$0xff] %v279
        %284 = vst [vmem:[%s216 + $0x10] sm:$0xff] %v280
        %285 = vst [vmem:[%s216 + $0x18] sm:$0xff] %v281
        %s286 = sand.u32 %s100, 1
        %s287 = sand.u32 %s100, 1
        %s288 = smul.addr %s287, 32
        %s289 = scalar_lea.vmem [#allocation3], %s288
        // Predicated region
        $region56: #{tpu_custom_call.1} parent=50 // pred_check
          %p290 = pneg %p110
        $region57: #{tpu_custom_call.1} parent=50 // pred_check_branch
          %292 = sbr.rel (%p290) target = $region59
        $region58: #{tpu_custom_call.1} parent=50 // pred_region
          %s293 = smul.addr %s14, 2
          %s294 = smul.addr %s293, 8
          %s295 = scalar_lea.vmem %s3, %s294
          // Predicated region
          $region60: #{tpu_custom_call.1} parent=58 // pred_check
            _
          $region61: #{tpu_custom_call.1} parent=58 // pred_check_branch
            %297 = sbr.rel (0) target = $region63
          $region62: #{tpu_custom_call.1} parent=58 // pred_region
            // Predicated region
            $region64: #{tpu_custom_call.1} parent=62 // pred_check
              _
            $region65: #{tpu_custom_call.1} parent=62 // pred_check_branch
              %299 = sbr.rel (0) target = $region67
            $region66: #{tpu_custom_call.1} parent=62 // pred_region
              loop: start=0, step=1, limit=1
              $region68: #{tpu_custom_call.1} parent=66 // loop_pre_header
                _
              $region69: #{tpu_custom_call.1} parent=66 // loop_header
                %s301 = sphi 0, %s305
                %p302 = scmp.ge.s32.totalorder %s301, 1
                %s306 = sphi %s289, %s289
                %s307 = sphi %s295, %s295
              $region70: #{tpu_custom_call.1} parent=66 // loop_header_branch
                %304 = sbr.rel (%p302) target = $region74
              $region71: #{tpu_custom_call.1} parent=66 // loop_body
                %v308 = vld [vmem:[%s306] sm:$0xff]
                %309 = vst [vmem:[%s307] sm:$0xff] %v308
                %v310 = vld [vmem:[%s306 + $0x8] sm:$0xff]
                %311 = vst [vmem:[%s307 + $0x8] sm:$0xff] %v310
                %v312 = vld [vmem:[%s306 + $0x10] sm:$0xff]
                %313 = vst [vmem:[%s307 + $0x20] sm:$0xff] %v312
                %v314 = vld [vmem:[%s306 + $0x18] sm:$0xff]
                %315 = vst [vmem:[%s307 + $0x28] sm:$0xff] %v314
              $region72: #{tpu_custom_call.1} parent=66 // loop_footer
                %s305 = sadd.s32 1, %s301
              $region73: #{tpu_custom_call.1} parent=66 // loop_footer_branch
                %300 = sbr.rel target = $region69
              $region74: #{tpu_custom_call.1} parent=66 // loop_exit
                _
            $region67: #{tpu_custom_call.1} parent=62 // pred_fallthru
              _
            // Predicated region
            $region75: #{tpu_custom_call.1} parent=62 // pred_check
              _
            $region76: #{tpu_custom_call.1} parent=62 // pred_check_branch
              %317 = sbr.rel target = $region78
            $region77: #{tpu_custom_call.1} parent=62 // pred_region
              _
            $region78: #{tpu_custom_call.1} parent=62 // pred_fallthru
              _
          $region63: #{tpu_custom_call.1} parent=58 // pred_fallthru
            _
          %318 = vnop
        $region59: #{tpu_custom_call.1} parent=50 // pred_fallthru
          _
      $region51: #{tpu_custom_call.1} parent=5 // pred_fallthru
        _
      %p319 = scmp.le.s32.totalorder 2, %s9
      // Predicated region
      $region79: #{tpu_custom_call.1} parent=5 // pred_check
        %p320 = pneg %p319
      $region80: #{tpu_custom_call.1} parent=5 // pred_check_branch
        %322 = sbr.rel (%p320) target = $region82
      $region81: #{tpu_custom_call.1} parent=5 // pred_region
        %s323 = ssub.s32 %s9, 2
        // Predicated region
        $region83: #{tpu_custom_call.1} parent=81 // pred_check
          %p324 = pneg %p116
        $region84: #{tpu_custom_call.1} parent=81 // pred_check_branch
          %326 = sbr.rel (%p324) target = $region86
        $region85: #{tpu_custom_call.1} parent=81 // pred_region
          %s327 = sand.u32 %s101, 1
          %s328 = sand.u32 %s101, 1
          %s329 = smul.addr %s328, 32
          %s330 = scalar_lea.vmem [#allocation3], %s329
        $region86: #{tpu_custom_call.1} parent=81 // pred_fallthru
          _
      $region82: #{tpu_custom_call.1} parent=5 // pred_fallthru
        _
    $region6: #{tpu_custom_call.1} parent=1 // loop_footer
      %s13 = sadd.s32 1, %s9
    $region7: #{tpu_custom_call.1} parent=1 // loop_footer_branch
      %8 = sbr.rel target = $region3
    $region8: #{tpu_custom_call.1} parent=1 // loop_exit
      _

</llo_original>
